<compile_context>
chip_gen: v7x
topology: tpu7x:2x2x1
jax: 0.10.0
libtpu: 0.0.40
codegen_flags: <defaults>
</compile_context>

<pallas_src>
import jax
import jax.numpy as jnp
from jax import lax
from jax.experimental import pallas as pl
from jax.experimental.pallas import tpu as pltpu


# ---------------------------------------------------------------------------
# Prologue kernel: fused 1x1-conv Q/K/V projection (one GEMM per row tile).
# Weight columns are laid out [ value | query | key ] so the value slice is
# lane-aligned at 0 and the query slice starts at Cp (a multiple of 128).
# ---------------------------------------------------------------------------
def _proj_kernel(x_ref, w_ref, b_ref, q_ref, k_ref, v_ref):
    Cp = v_ref.shape[-1]
    Cq = q_ref.shape[-1]
    # bf16 inputs, f32 accumulation on the MXU, then bias add in f32.
    p = jnp.dot(x_ref[...], w_ref[...],
                preferred_element_type=jnp.float32) + b_ref[...]
    v_ref[...] = p[:, :Cp].astype(v_ref.dtype)
    q_ref[...] = p[:, Cp:Cp + Cq].astype(q_ref.dtype)
    k_ref[...] = p[:, Cp + Cq:].astype(k_ref.dtype)


# ---------------------------------------------------------------------------
# Flash-attention kernel over grid (batch, q-tile, kv-tile).
# If add_residual, fuses `gamma * out + x` (the scale == 1 path).
# ---------------------------------------------------------------------------
def _make_flash_kernel(add_residual: bool):
    def kernel(*refs):
        if add_residual:
            (q_ref, k_ref, v_ref, res_ref, gamma_ref,
             o_ref, m_sc, l_sc, acc_sc) = refs
        else:
            (q_ref, k_ref, v_ref, gamma_ref,
             o_ref, m_sc, l_sc, acc_sc) = refs

        ki = pl.program_id(2)

        @pl.when(ki == 0)
        def _():
            m_sc[...] = jnp.full(m_sc.shape, -jnp.inf, dtype=jnp.float32)
            l_sc[...] = jnp.zeros(l_sc.shape, dtype=jnp.float32)
            acc_sc[...] = jnp.zeros(acc_sc.shape, dtype=jnp.float32)

        # scores s[i, j] = <q_i, k_j>  (torch: bmm(query, key); no 1/sqrt scale,
        # matching the PyTorch module).  bf16 inputs, f32 accumulation.
        s = lax.dot_general(q_ref[...], k_ref[...],
                            (((1,), (1,)), ((), ())),
                            preferred_element_type=jnp.float32)        # (TQ, TK)

        # --- online softmax over the kv axis (f32 bookkeeping) ---
        m_prev = m_sc[...]                                             # (TQ, 1)
        m_new = jnp.maximum(m_prev, jnp.max(s, axis=-1, keepdims=True))
        alpha = jnp.exp(m_prev - m_new)
        p = jnp.exp(s - m_new)                                         # f32 exp (EUP)
        l_sc[...] = alpha * l_sc[...] + jnp.sum(p, axis=-1, keepdims=True)
        acc_sc[...] = alpha * acc_sc[...] + jnp.dot(
            p.astype(jnp.bfloat16), v_ref[...],
            preferred_element_type=jnp.float32)                        # (TQ, Cp)
        m_sc[...] = m_new

        @pl.when(ki == pl.num_programs(2) - 1)
        def _():
            # Normalize once on the (TQ, Cp) accumulator, not the prob tiles.
            out = acc_sc[...] * pl.reciprocal(l_sc[...], approx=True)
            out = gamma_ref[0, 0] * out
            if add_residual:
                out = out + res_ref[...]       # residual stays f32
            o_ref[...] = out.astype(o_ref.dtype)

    return kernel


def _pick_tile(n, preferred):
    """Largest divisor of n that is <= preferred and sublane-aligned (or n)."""
    t = min(int(preferred), n)
    while t >= 8:
        if n % t == 0 and (t % 8 == 0 or t == n):
            return t
        t -= 1
    return n


def attention_block(x, wq, bq, wk, bk, wv, bv, gamma, *, tq=512, tk=1024):
    """Forward pass matching the PyTorch AttentionBlock.

    x:  (B, C, H, W) float32, NCHW
    wq, wk: (C//32, C)   1x1 conv weights (kernel dims squeezed)
    wv:      (C, C)
    bq, bk: (C//32,), bv: (C,), gamma: scalar
    """
    B, C, H, W = x.shape
    Cq = wq.shape[0]
    scale = max(1, int((H * W / 1024) ** 0.5))

    if scale > 1:
        # F.avg_pool2d(kernel=stride=scale, ceil_mode=False): floor output
        # size, remainder rows/cols dropped -> crop then window mean.
        H_down, W_down = H // scale, W // scale
        x_c = x[:, :, :H_down * scale, :W_down * scale]
        x_down = x_c.reshape(B, C, H_down, scale, W_down, scale).mean(axis=(3, 5))
    else:
        H_down, W_down = H, W
        x_down = x

    N = H_down * W_down
    add_residual = (scale == 1)

    # spatial-major layout, channels on the 128-lane axis
    x_sp = jnp.transpose(x_down, (0, 2, 3, 1)).reshape(B, N, C)

    # Lane-dense channel padding (value/output channels -> multiple of 128).
    Cp = ((C + 127) // 128) * 128
    pad_c = Cp - C
    if pad_c:
        x_sp_p = jnp.pad(x_sp, ((0, 0), (0, 0), (0, pad_c)))
        wv_p = jnp.pad(wv, ((0, pad_c), (0, pad_c)))
        bv_p = jnp.pad(bv, (0, pad_c))
        wq_p = jnp.pad(wq, ((0, 0), (0, pad_c)))
        wk_p = jnp.pad(wk, ((0, 0), (0, pad_c)))
    else:
        x_sp_p, wv_p, bv_p, wq_p, wk_p = x_sp, wv, bv, wq, wk

    # bf16 input stream for the projection GEMM (halves HBM traffic).
    x_bf = x_sp_p.astype(jnp.bfloat16)

    # Fused projection weight, column layout [ v | q | k ].
    w_fused = jnp.concatenate([wv_p.T, wq_p.T, wk_p.T], axis=1).astype(jnp.bfloat16)
    b_fused = jnp.concatenate([bv_p, bq, bk]).reshape(1, Cp + 2 * Cq).astype(jnp.float32)

    # ---------------- prologue: Q/K/V projection (once per row) -------------
    TN = _pick_tile(N, 1024)
    # TODO(synk): the constant-index weight/bias specs could be single-buffered
    # (pipeline_mode=pl.Buffered(1)) to save VMEM headroom on very large C.
    q_all, k_all, v_all = pl.pallas_call(
        _proj_kernel,
        out_shape=(
            jax.ShapeDtypeStruct((B, N, Cq), jnp.bfloat16),
            jax.ShapeDtypeStruct((B, N, Cq), jnp.bfloat16),
            jax.ShapeDtypeStruct((B, N, Cp), jnp.bfloat16),
        ),
        grid_spec=pltpu.PrefetchScalarGridSpec(
            num_scalar_prefetch=0,
            grid=(B, N // TN),
            in_specs=[
                pl.BlockSpec((pl.Squeezed(), TN, Cp), lambda b, i: (b, i, 0)),
                pl.BlockSpec((Cp, Cp + 2 * Cq), lambda b, i: (0, 0)),
                pl.BlockSpec((1, Cp + 2 * Cq), lambda b, i: (0, 0)),
            ],
            out_specs=[
                pl.BlockSpec((pl.Squeezed(), TN, Cq), lambda b, i: (b, i, 0)),
                pl.BlockSpec((pl.Squeezed(), TN, Cq), lambda b, i: (b, i, 0)),
                pl.BlockSpec((pl.Squeezed(), TN, Cp), lambda b, i: (b, i, 0)),
            ],
        ),
        compiler_params=pltpu.CompilerParams(
            dimension_semantics=("parallel", "parallel")),
    )(x_bf, w_fused, b_fused)

    # ---------------- flash attention over (B, q-tiles, kv-tiles) -----------
    TQ = _pick_tile(N, tq)
    TK = _pick_tile(N, tk)
    # Keep >= 2 parallel grid points so both v7x TensorCores stay busy.
    if B * (N // TQ) < 2 and TQ % 2 == 0 and (TQ // 2) % 8 == 0 and N % (TQ // 2) == 0:
        TQ //= 2

    kernel = _make_flash_kernel(add_residual)

    in_specs = [
        pl.BlockSpec((pl.Squeezed(), TQ, Cq), lambda b, qi, ki: (b, qi, 0)),  # q
        # TODO(synk): if profiling on v6e shows exposed DMA on the k/v streams,
        # add pipeline_mode=pl.Buffered(3) to these two specs.
        pl.BlockSpec((pl.Squeezed(), TK, Cq), lambda b, qi, ki: (b, ki, 0)),  # k
        pl.BlockSpec((pl.Squeezed(), TK, Cp), lambda b, qi, ki: (b, ki, 0)),  # v
    ]
    args = [q_all, k_all, v_all]
    if add_residual:
        # f32 residual; block index is constant across ki -> fetched once per q-tile.
        in_specs.append(
            pl.BlockSpec((pl.Squeezed(), TQ, Cp), lambda b, qi, ki: (b, qi, 0)))
        args.append(x_sp_p)
    in_specs.append(pl.BlockSpec(memory_space=pltpu.MemorySpace.SMEM))        # gamma
    args.append(jnp.full((1, 1), gamma, jnp.float32))

    # Rough VMEM working-set estimate (double-buffered I/O + scratch + s/p temps);
    # bump the scoped limit past v5e's 16 MiB default when large tiles need it,
    # but stay well under v7x's 64 MiB physical VMEM.
    vmem_est = (
        2 * 2 * (TQ * Cq + TK * Cq + TK * Cp)                  # bf16 q/k/v (x2 buf)
        + (2 * TQ * Cp * 4 if add_residual else 0)             # f32 residual
        + 2 * TQ * Cp * 4                                      # f32 output (x2 buf)
        + TQ * Cp * 4 + 2 * TQ * 4                             # acc + m/l scratch
        + 4 * TQ * TK * 4                                      # s/p temporaries
    )
    vmem_limit = None
    if vmem_est > 16 * 1024 * 1024:
        vmem_limit = min(int(vmem_est * 1.25), 48 * 1024 * 1024)

    grid_spec = pltpu.PrefetchScalarGridSpec(
        num_scalar_prefetch=0,
        grid=(B, N // TQ, N // TK),
        in_specs=in_specs,
        out_specs=pl.BlockSpec((pl.Squeezed(), TQ, Cp), lambda b, qi, ki: (b, qi, 0)),
        scratch_shapes=[
            pltpu.VMEM((TQ, 1), jnp.float32),    # running max
            pltpu.VMEM((TQ, 1), jnp.float32),    # running sum
            pltpu.VMEM((TQ, Cp), jnp.float32),   # output accumulator
        ],
    )

    out_sp = pl.pallas_call(
        kernel,
        out_shape=jax.ShapeDtypeStruct((B, N, Cp), jnp.float32),
        grid_spec=grid_spec,
        compiler_params=pltpu.CompilerParams(
            dimension_semantics=("parallel", "parallel", "arbitrary"),
            vmem_limit_bytes=vmem_limit),
    )(*args)

    if pad_c:
        out_sp = out_sp[..., :C]
    out = jnp.transpose(out_sp.reshape(B, H_down, W_down, C), (0, 3, 1, 2))

    if add_residual:
        # kernel already fused gamma * attn_out + x
        return out
    # gamma was applied inside the kernel; bilinear upsample commutes with it.
    # TODO(synk): jax.image.resize 'bilinear' matches PyTorch align_corners=False
    # half-pixel semantics in the interior but may differ at exact borders for
    # aggressive downscales.
    out_up = jax.image.resize(out, (B, C, H, W), method='bilinear')
    return out_up + x


def reference(x, wq, bq, wk, bk, wv, bv, gamma):
    """Pure-JAX f32 replica of the PyTorch forward (scale == 1 path)."""
    B, C, H, W = x.shape
    scale = max(1, int((H * W / 1024) ** 0.5))
    assert scale == 1, "reference only covers the no-downsample path"
    N = H * W
    x_flat = x.reshape(B, C, N)
    q = jnp.einsum('oc,bcn->bon', wq, x_flat) + bq[None, :, None]   # (B, Cq, N)
    k = jnp.einsum('oc,bcn->bon', wk, x_flat) + bk[None, :, None]   # (B, Cq, N)
    v = jnp.einsum('oc,bcn->bon', wv, x_flat) + bv[None, :, None]   # (B, C, N)
    attn = jnp.einsum('bci,bcj->bij', q, k)                         # (B, N, N)
    attn = jax.nn.softmax(attn, axis=2)
    out = jnp.einsum('bcj,bij->bci', v, attn).reshape(B, C, H, W)
    return gamma * out + x


if __name__ == "__main__":
    B, C, H, W = 2, 64, 16, 16          # channels must be >= 32 (C // 32 conv)
    Cq = C // 32

    key = jax.random.PRNGKey(0)
    kx, k1, k2, k3, k4, k5, k6 = jax.random.split(key, 7)

    x = jax.random.normal(kx, (B, C, H, W), jnp.float32)
    wq = jax.random.normal(k1, (Cq, C), jnp.float32) * 0.1
    bq = jax.random.normal(k2, (Cq,), jnp.float32) * 0.1
    wk = jax.random.normal(k3, (Cq, C), jnp.float32) * 0.1
    bk = jax.random.normal(k4, (Cq,), jnp.float32) * 0.1
    wv = jax.random.normal(k5, (C, C), jnp.float32) * 0.1
    bv = jax.random.normal(k6, (C,), jnp.float32) * 0.1
    # PyTorch inits gamma to zero; use a nonzero deterministic value so the
    # attention path actually contributes to the checked output.
    gamma = jnp.float32(0.5)

    # tq=tk=128 with N=256 -> flash grid (B, 2, 2): exercises the multi-tile
    # online-softmax accumulation path (scale == 1, residual fused in kernel).
    out = jax.block_until_ready(
        attention_block(x, wq, bq, wk, bk, wv, bv, gamma, tq=128, tk=128))
    ref = reference(x, wq, bq, wk, bk, wv, bv, gamma)

    assert out.shape == (B, C, H, W)
    max_err = float(jnp.max(jnp.abs(out - ref)))
    # bf16 MXU inputs / approx reciprocal => looser tolerance than the all-f32
    # reference (exp itself stays in f32).
    assert jnp.allclose(out, ref, atol=5e-2, rtol=5e-2), max_err

    # Smoke-test the downsample path (scale > 1): H=W=64 -> scale=2, N=1024,
    # large default tiles (TQ=512, TK=1024), bilinear upsample + residual in
    # the wrapper.
    x_big = jax.random.normal(kx, (B, C, 64, 64), jnp.float32)
    out_big = jax.block_until_ready(
        attention_block(x_big, wq, bq, wk, bk, wv, bv, gamma))
    assert out_big.shape == (B, C, 64, 64)
    assert bool(jnp.all(jnp.isfinite(out_big)))

    print("KERNEL_OK")
</pallas_src>

<mosaic_0001>
module attributes {stable_mosaic.version = 11 : i64} {
  func.func @_proj_kernel(%arg0: i32, %arg1: i32, %arg2: memref<1x256x128xbf16, #tpu.memory_space<vmem>>, %arg3: memref<128x132xbf16, #tpu.memory_space<vmem>>, %arg4: memref<1x132xf32, #tpu.memory_space<vmem>>, %arg5: memref<1x256x2xbf16, #tpu.memory_space<vmem>>, %arg6: memref<1x256x2xbf16, #tpu.memory_space<vmem>>, %arg7: memref<1x256x128xbf16, #tpu.memory_space<vmem>>) attributes {dimension_semantics = [#tpu.dimension_semantics<parallel>, #tpu.dimension_semantics<parallel>], iteration_bounds = array<i64: 2, 1>, scalar_prefetch = 0 : i64, scratch_operands = 0 : i64, tpu.core_type = #tpu.core_type<tc>, window_params = [{transform_indices = @transform_0, window_bounds = array<i64: 1, 256, 128>}, {pipeline_mode = #tpu.pipeline_mode<synchronous>, transform_indices = @transform_1, window_bounds = array<i64: 128, 132>}, {pipeline_mode = #tpu.pipeline_mode<synchronous>, transform_indices = @transform_2, window_bounds = array<i64: 1, 132>}, {transform_indices = @transform_3, window_bounds = array<i64: 1, 256, 2>}, {transform_indices = @transform_4, window_bounds = array<i64: 1, 256, 2>}, {transform_indices = @transform_5, window_bounds = array<i64: 1, 256, 128>}]} {
    %c0 = arith.constant 0 : index
    %c0_0 = arith.constant 0 : index
    %c0_1 = arith.constant 0 : index
    %0 = vector.load %arg2[%c0, %c0_0, %c0_1] : memref<1x256x128xbf16, #tpu.memory_space<vmem>>, vector<1x256x128xbf16>
    %1 = vector.shape_cast %0 : vector<1x256x128xbf16> to vector<256x128xbf16>
    %c0_2 = arith.constant 0 : index
    %c0_3 = arith.constant 0 : index
    %2 = vector.load %arg3[%c0_2, %c0_3] : memref<128x132xbf16, #tpu.memory_space<vmem>>, vector<128x132xbf16>
    %cst = arith.constant dense<0.000000e+00> : vector<256x132xf32>
    %3 = tpu.matmul %1, %2, %cst {dimension_numbers = #tpu.dot_dimension_numbers<[1], [0], [0], [1], [0, 0, 1, 1], [], []>} : vector<256x128xbf16>, vector<128x132xbf16>, vector<256x132xf32> -> vector<256x132xf32>
    %c0_4 = arith.constant 0 : index
    %c0_5 = arith.constant 0 : index
    %4 = vector.load %arg4[%c0_4, %c0_5] : memref<1x132xf32, #tpu.memory_space<vmem>>, vector<1x132xf32>
    %5 = vector.broadcast %4 : vector<1x132xf32> to vector<256x132xf32>
    %6 = arith.addf %3, %5 : vector<256x132xf32>
    %7 = vector.extract_strided_slice %6 {offsets = [0, 0], sizes = [256, 128], strides = [1, 1]} : vector<256x132xf32> to vector<256x128xf32>
    %8 = arith.truncf %7 : vector<256x128xf32> to vector<256x128xbf16>
    %c0_6 = arith.constant 0 : index
    %c0_7 = arith.constant 0 : index
    %c0_8 = arith.constant 0 : index
    %9 = vector.load %arg7[%c0_6, %c0_7, %c0_8] : memref<1x256x128xbf16, #tpu.memory_space<vmem>>, vector<1x256x128xbf16>
    %10 = vector.shape_cast %9 : vector<1x256x128xbf16> to vector<256x128xbf16>
    %11 = vector.shape_cast %8 : vector<256x128xbf16> to vector<1x256x128xbf16>
    tpu.vector_store %arg7[%c0_6, %c0_7, %c0_8], %11 {strides = array<i32>} : memref<1x256x128xbf16, #tpu.memory_space<vmem>>, vector<1x256x128xbf16>,
    %12 = vector.extract_strided_slice %6 {offsets = [0, 128], sizes = [256, 2], strides = [1, 1]} : vector<256x132xf32> to vector<256x2xf32>
    %13 = arith.truncf %12 : vector<256x2xf32> to vector<256x2xbf16>
    %c0_9 = arith.constant 0 : index
    %c0_10 = arith.constant 0 : index
    %c0_11 = arith.constant 0 : index
    %14 = vector.load %arg5[%c0_9, %c0_10, %c0_11] : memref<1x256x2xbf16, #tpu.memory_space<vmem>>, vector<1x256x2xbf16>
    %15 = vector.shape_cast %14 : vector<1x256x2xbf16> to vector<256x2xbf16>
    %16 = vector.shape_cast %13 : vector<256x2xbf16> to vector<1x256x2xbf16>
    tpu.vector_store %arg5[%c0_9, %c0_10, %c0_11], %16 {strides = array<i32>} : memref<1x256x2xbf16, #tpu.memory_space<vmem>>, vector<1x256x2xbf16>,
    %17 = vector.extract_strided_slice %6 {offsets = [0, 130], sizes = [256, 2], strides = [1, 1]} : vector<256x132xf32> to vector<256x2xf32>
    %18 = arith.truncf %17 : vector<256x2xf32> to vector<256x2xbf16>
    %c0_12 = arith.constant 0 : index
    %c0_13 = arith.constant 0 : index
    %c0_14 = arith.constant 0 : index
    %19 = vector.load %arg6[%c0_12, %c0_13, %c0_14] : memref<1x256x2xbf16, #tpu.memory_space<vmem>>, vector<1x256x2xbf16>
    %20 = vector.shape_cast %19 : vector<1x256x2xbf16> to vector<256x2xbf16>
    %21 = vector.shape_cast %18 : vector<256x2xbf16> to vector<1x256x2xbf16>
    tpu.vector_store %arg6[%c0_12, %c0_13, %c0_14], %21 {strides = array<i32>} : memref<1x256x2xbf16, #tpu.memory_space<vmem>>, vector<1x256x2xbf16>,
    return
  }
  func.func @transform_0(%arg0: i32, %arg1: i32) -> (i32, i32, i32) {
    %c0_i32 = arith.constant 0 : i32
    %c0_i32_0 = arith.constant 0 : i32
    return %arg0, %arg1, %c0_i32 : i32, i32, i32
  }
  func.func @transform_1(%arg0: i32, %arg1: i32) -> (i32, i32) {
    %c0_i32 = arith.constant 0 : i32
    %c0_i32_0 = arith.constant 0 : i32
    %c0_i32_1 = arith.constant 0 : i32
    return %c0_i32, %c0_i32_0 : i32, i32
  }
  func.func @transform_2(%arg0: i32, %arg1: i32) -> (i32, i32) {
    %c0_i32 = arith.constant 0 : i32
    %c0_i32_0 = arith.constant 0 : i32
    %c0_i32_1 = arith.constant 0 : i32
    return %c0_i32, %c0_i32_0 : i32, i32
  }
  func.func @transform_3(%arg0: i32, %arg1: i32) -> (i32, i32, i32) {
    %c0_i32 = arith.constant 0 : i32
    %c0_i32_0 = arith.constant 0 : i32
    return %arg0, %arg1, %c0_i32 : i32, i32, i32
  }
  func.func @transform_4(%arg0: i32, %arg1: i32) -> (i32, i32, i32) {
    %c0_i32 = arith.constant 0 : i32
    %c0_i32_0 = arith.constant 0 : i32
    return %arg0, %arg1, %c0_i32 : i32, i32, i32
  }
  func.func @transform_5(%arg0: i32, %arg1: i32) -> (i32, i32, i32) {
    %c0_i32 = arith.constant 0 : i32
    %c0_i32_0 = arith.constant 0 : i32
    return %arg0, %arg1, %c0_i32 : i32, i32, i32
  }
}

</mosaic_0001>

<llo_original>
// kernel: tpu_custom_call.1
$region0: #{tpu_custom_call.1}
  #allocation0 [shape = 'u32[]', space=smem, size = 0x4, offset = 0x4, fixed_abs, tag = 'smem constant byte address 0x4 - core index']
  #allocation1 [shape = 'u32[144,128]{1,0:T(1,128)}', space=vmem, size = 0x12000, scoped, tag = 'internal scratch']
  %s0 = inlined_call_operand.hbm [shape: bf16[2,256,128], index: 0, kind: input, shape index: {}]
  %s1 = inlined_call_operand.vmem [shape: bf16[128,132], index: 1, kind: input, shape index: {}]
  %s2 = inlined_call_operand.vmem [shape: f32[1,132], index: 2, kind: input, shape index: {}]
  %s3 = inlined_call_operand.vmem [shape: bf16[2,256,2], index: 3, kind: output, shape index: {0}]
  %s4 = inlined_call_operand.vmem [shape: bf16[2,256,2], index: 4, kind: output, shape index: {1}]
  %s5 = inlined_call_operand.hbm [shape: bf16[2,256,128], index: 5, kind: output, shape index: {2}]
  %6 = xla_tuple %s3, %s4, %s5
  %s7 = sld [smem:[#allocation0]]
  $region65: #{tpu_custom_call.1} parent=0
    _
  %s9 = ssub.s32 1, %s7
  %s10 = scalar_select 0, %s9, %s7
  $region1: #{tpu_custom_call.1} parent=0
    #allocation2 [shape = 'u8[131072]{0}', space=vmem, size = 0x20000, scoped, tag = 'input window, operand 0']
    #allocation3 [shape = 's32[2]{0}', space=sflag, size = 0x8, scoped, tag = 'scoped memory for tpu_custom_call.1']
    #allocation4 [shape = 's32[2]{0}', space=sflag, size = 0x8, scoped, tag = 'scoped memory for tpu_custom_call.1']
    #allocation5 [shape = 'u8[131072]{0}', space=vmem, size = 0x20000, scoped, tag = 'output window, operand 2']
    %11 = vsyncpa [#allocation3], 0
    %s12 = scalar_lea.sflag [#allocation3], 1
    %13 = vsyncpa %s12, 0
    %14 = vsyncpa [#allocation4], 0
    %s15 = scalar_lea.sflag [#allocation4], 1
    %16 = vsyncpa %s15, 0
    loop: start=0, step=1, limit=4
    $region2: #{tpu_custom_call.1} parent=1 // loop_pre_header
      _
    $region3: #{tpu_custom_call.1} parent=1 // loop_header
      %s18 = sphi 0, %s22
      %p19 = scmp.ge.s32.totalorder %s18, 4
      %s25 = sphi 0, %s37
      %s26 = sphi 0, %s33
      %s27 = sphi 0, %s25
      %s28 = sphi 0, %s26
      %s29 = sphi 0, %s27
      %s30 = sphi 0, %s28
      %s42 = sphi 0, %s44
      %s45 = sphi 0, %s42
      %s46 = sphi 0, %s45
      %s62 = sphi 0, %s46
      %s66 = sphi 0, %s66
      %s68 = sphi 0, %s66
      %s69 = sphi 0, %s68
      %s83 = sphi 0, %s69
      %s87 = sphi 0, %s87
      %s89 = sphi 0, %s87
      %s90 = sphi 0, %s89
      %s104 = sphi 0, %s90
      %s112 = sphi 0, %s114
      %s115 = sphi 0, %s112
      %s116 = sphi 0, %s115
      %s132 = sphi 0, %s116
      %s140 = sphi 0, %s142
      %s143 = sphi 0, %s140
      %s144 = sphi 0, %s143
      %s160 = sphi 0, %s144
      %s168 = sphi 0, %s170
      %s171 = sphi 0, %s168
      %s172 = sphi 0, %s171
      %s188 = sphi 0, %s172
    $region4: #{tpu_custom_call.1} parent=1 // loop_header_branch
      %21 = sbr.rel (%p19) target = $region8
    $region5: #{tpu_custom_call.1} parent=1 // loop_body
      %s23 = ssub.s32 %s18, 1
      %s24 = ssub.s32 %s18, 2
      %s31 = sadd.s32 1, %s26
      %p32 = scmp.ge.s32.totalorder %s31, 1
      %s33 = scalar_select %p32, 0, %s31
      %s34 = sadd.s32 1, %s25
      %s35 = scalar_select %p32, %s34, %s25
      %p36 = scmp.ge.s32.totalorder %s35, 2
      %s37 = scalar_select %p36, 0, %s35
      %s38 = ssub.s32 %s25, %s37
      %s39 = ssub.s32 %s26, %s33
      %s40 = sor.u32 %s38, %s39
      %p41 = scmp.eq.s32.totalorder %s40, 0
      %s43 = sadd.s32 %s42, 1
      %s44 = scalar_select %p41, %s42, %s43
      %p47 = pneg %p41
      %p48 = scmp.eq.s32.totalorder %s18, 1
      %p49 = por %p47, %p48
      %p50 = scmp.ne.s32.totalorder %s42, %s45
      %p51 = scmp.eq.s32.totalorder %s18, 0
      %p52 = por %p50, %p51
      %p53 = scmp.ne.s32.totalorder %s42, %s45
      %p54 = scmp.eq.s32.totalorder %s23, 1
      %p55 = por %p53, %p54
      %p56 = scmp.ne.s32.totalorder %s45, %s46
      %p57 = scmp.eq.s32.totalorder %s23, 0
      %p58 = por %p56, %p57
      %p59 = scmp.ne.s32.totalorder %s45, %s46
      %p60 = scmp.eq.s32.totalorder %s24, 1
      %p61 = por %p59, %p60
      %p63 = scmp.ne.s32.totalorder %s46, %s62
      %p64 = scmp.eq.s32.totalorder %s24, 0
      %p65 = por %p63, %p64
      %s67 = sadd.s32 %s66, 1
      %p70 = scmp.eq.s32.totalorder %s18, 1
      %p71 = scmp.ne.s32.totalorder %s66, %s68
      %p72 = scmp.eq.s32.totalorder %s18, 0
      %p73 = por %p71, %p72
      %p74 = scmp.ne.s32.totalorder %s66, %s68
      %p75 = scmp.eq.s32.totalorder %s23, 1
      %p76 = por %p74, %p75
      %p77 = scmp.ne.s32.totalorder %s68, %s69
      %p78 = scmp.eq.s32.totalorder %s23, 0
      %p79 = por %p77, %p78
      %p80 = scmp.ne.s32.totalorder %s68, %s69
      %p81 = scmp.eq.s32.totalorder %s24, 1
      %p82 = por %p80, %p81
      %p84 = scmp.ne.s32.totalorder %s69, %s83
      %p85 = scmp.eq.s32.totalorder %s24, 0
      %p86 = por %p84, %p85
      %s88 = sadd.s32 %s87, 1
      %p91 = scmp.eq.s32.totalorder %s18, 1
      %p92 = scmp.ne.s32.totalorder %s87, %s89
      %p93 = scmp.eq.s32.totalorder %s18, 0
      %p94 = por %p92, %p93
      %p95 = scmp.ne.s32.totalorder %s87, %s89
      %p96 = scmp.eq.s32.totalorder %s23, 1
      %p97 = por %p95, %p96
      %p98 = scmp.ne.s32.totalorder %s89, %s90
      %p99 = scmp.eq.s32.totalorder %s23, 0
      %p100 = por %p98, %p99
      %p101 = scmp.ne.s32.totalorder %s89, %s90
      %p102 = scmp.eq.s32.totalorder %s24, 1
      %p103 = por %p101, %p102
      %p105 = scmp.ne.s32.totalorder %s90, %s104
      %p106 = scmp.eq.s32.totalorder %s24, 0
      %p107 = por %p105, %p106
      %s108 = ssub.s32 %s25, %s37
      %s109 = ssub.s32 %s26, %s33
      %s110 = sor.u32 %s108, %s109
      %p111 = scmp.eq.s32.totalorder %s110, 0
      %s113 = sadd.s32 %s112, 1
      %s114 = scalar_select %p111, %s112, %s113
      %p117 = pneg %p111
      %p118 = scmp.eq.s32.totalorder %s18, 1
      %p119 = por %p117, %p118
      %p120 = scmp.ne.s32.totalorder %s112, %s115
      %p121 = scmp.eq.s32.totalorder %s18, 0
      %p122 = por %p120, %p121
      %p123 = scmp.ne.s32.totalorder %s112, %s115
      %p124 = scmp.eq.s32.totalorder %s23, 1
      %p125 = por %p123, %p124
      %p126 = scmp.ne.s32.totalorder %s115, %s116
      %p127 = scmp.eq.s32.totalorder %s23, 0
      %p128 = por %p126, %p127
      %p129 = scmp.ne.s32.totalorder %s115, %s116
      %p130 = scmp.eq.s32.totalorder %s24, 1
      %p131 = por %p129, %p130
      %p133 = scmp.ne.s32.totalorder %s116, %s132
      %p134 = scmp.eq.s32.totalorder %s24, 0
      %p135 = por %p133, %p134
      %s136 = ssub.s32 %s25, %s37
      %s137 = ssub.s32 %s26, %s33
      %s138 = sor.u32 %s136, %s137
      %p139 = scmp.eq.s32.totalorder %s138, 0
      %s141 = sadd.s32 %s140, 1
      %s142 = scalar_select %p139, %s140, %s141
      %p145 = pneg %p139
      %p146 = scmp.eq.s32.totalorder %s18, 1
      %p147 = por %p145, %p146
      %p148 = scmp.ne.s32.totalorder %s140, %s143
      %p149 = scmp.eq.s32.totalorder %s18, 0
      %p150 = por %p148, %p149
      %p151 = scmp.ne.s32.totalorder %s140, %s143
      %p152 = scmp.eq.s32.totalorder %s23, 1
      %p153 = por %p151, %p152
      %p154 = scmp.ne.s32.totalorder %s143, %s144
      %p155 = scmp.eq.s32.totalorder %s23, 0
      %p156 = por %p154, %p155
      %p157 = scmp.ne.s32.totalorder %s143, %s144
      %p158 = scmp.eq.s32.totalorder %s24, 1
      %p159 = por %p157, %p158
      %p161 = scmp.ne.s32.totalorder %s144, %s160
      %p162 = scmp.eq.s32.totalorder %s24, 0
      %p163 = por %p161, %p162
      %s164 = ssub.s32 %s25, %s37
      %s165 = ssub.s32 %s26, %s33
      %s166 = sor.u32 %s164, %s165
      %p167 = scmp.eq.s32.totalorder %s166, 0
      %s169 = sadd.s32 %s168, 1
      %s170 = scalar_select %p167, %s168, %s169
      %p173 = pneg %p167
      %p174 = scmp.eq.s32.totalorder %s18, 1
      %p175 = por %p173, %p174
      %p176 = scmp.ne.s32.totalorder %s168, %s171
      %p177 = scmp.eq.s32.totalorder %s18, 0
      %p178 = por %p176, %p177
      %p179 = scmp.ne.s32.totalorder %s168, %s171
      %p180 = scmp.eq.s32.totalorder %s23, 1
      %p181 = por %p179, %p180
      %p182 = scmp.ne.s32.totalorder %s171, %s172
      %p183 = scmp.eq.s32.totalorder %s23, 0
      %p184 = por %p182, %p183
      %p185 = scmp.ne.s32.totalorder %s171, %s172
      %p186 = scmp.eq.s32.totalorder %s24, 1
      %p187 = por %p185, %p186
      %p189 = scmp.ne.s32.totalorder %s172, %s188
      %p190 = scmp.eq.s32.totalorder %s24, 0
      %p191 = por %p189, %p190
      %p192 = scmp.le.s32.totalorder 1, %s18
      %p193 = scmp.lt.s32.totalorder %s18, 3
      %p194 = pnand %p192, %p193
      %p195 = pneg %p194
      // Predicated region
      $region9: #{tpu_custom_call.1} parent=5 // pred_check
        _
      $region10: #{tpu_custom_call.1} parent=5 // pred_check_branch
        %197 = sbr.rel (%p194) target = $region12
      $region11: #{tpu_custom_call.1} parent=5 // pred_region
        %s198 = ssub.s32 %s18, 1
        // Predicated region
        $region13: #{tpu_custom_call.1} parent=11 // pred_check
          %p199 = pneg %p79
        $region14: #{tpu_custom_call.1} parent=11 // pred_check_branch
          %201 = sbr.rel (%p199) target = $region16
        $region15: #{tpu_custom_call.1} parent=11 // pred_region
          _
        $region16: #{tpu_custom_call.1} parent=11 // pred_fallthru
          _
        // Predicated region
        $region17: #{tpu_custom_call.1} parent=11 // pred_check
          %p202 = pneg %p100
        $region18: #{tpu_custom_call.1} parent=11 // pred_check_branch
          %204 = sbr.rel (%p202) target = $region20
        $region19: #{tpu_custom_call.1} parent=11 // pred_region
          _
        $region20: #{tpu_custom_call.1} parent=11 // pred_fallthru
          _
      $region12: #{tpu_custom_call.1} parent=5 // pred_fallthru
        _
      %p205 = scmp.lt.s32.totalorder %s18, 2
      // Predicated region
      $region21: #{tpu_custom_call.1} parent=5 // pred_check
        %p206 = pneg %p205
      $region22: #{tpu_custom_call.1} parent=5 // pred_check_branch
        %208 = sbr.rel (%p206) target = $region24
      $region23: #{tpu_custom_call.1} parent=5 // pred_region
        // Predicated region
        $region25: #{tpu_custom_call.1} parent=23 // pred_check
          %p209 = pneg %p52
        $region26: #{tpu_custom_call.1} parent=23 // pred_check_branch
          %211 = sbr.rel (%p209) target = $region28
        $region27: #{tpu_custom_call.1} parent=23 // pred_region
          %s212 = sand.u32 %s42, 1
          %s213 = scalar_lea.sflag [#allocation3], %s212
          %s214 = sand.u32 %s42, 1
          %s215 = smul.addr %s214, 128
          %s216 = scalar_lea.vmem [#allocation2], %s215
          %s217 = smul.u32 32, %s26
          %s219 = ssub.s32 2048, 2048
          %220 = vsyncadd %s213, %s219
          %s221 = smul.addr %s25, 32
          %s222 = sadd.s32 %s217, %s221
          %s223 = smul.addr %s222, 64
          %s224 = scalar_lea.hbm %s0, %s223
          %s225 = sshll.u32 %s216, 4
          %s226 = int_to_ptr.vmem [resolvable:$true] %s225
          %231 = dma.hbm_to_vmem [thread:$0]  %s224, 2048, %s226, %s213, 64, 64, 4
        $region28: #{tpu_custom_call.1} parent=23 // pred_fallthru
          _
      $region24: #{tpu_custom_call.1} parent=5 // pred_fallthru
        _
      %p232 = scmp.le.s32.totalorder 1, %s18
      %p233 = scmp.lt.s32.totalorder %s18, 3
      %p234 = pnand %p232, %p233
      %p235 = pneg %p234
      // Predicated region
      $region29: #{tpu_custom_call.1} parent=5 // pred_check
        _
      $region30: #{tpu_custom_call.1} parent=5 // pred_check_branch
        %237 = sbr.rel (%p234) target = $region32
      $region31: #{tpu_custom_call.1} parent=5 // pred_region
        %s238 = ssub.s32 %s18, 1
        %s239 = sand.u32 %s45, 1
        %s240 = scalar_lea.sflag [#allocation3], %s239
        %s241 = sand.u32 %s45, 1
        %s242 = smul.addr %s241, 128
        %s243 = scalar_lea.vmem [#allocation2], %s242
        // Predicated region
        $region33: #{tpu_custom_call.1} parent=31 // pred_check
          %p244 = pneg %p58
        $region34: #{tpu_custom_call.1} parent=31 // pred_check_branch
          %246 = sbr.rel (%p244) target = $region36
        $region35: #{tpu_custom_call.1} parent=31 // pred_region
          %247 = dma.done %s240, 2048
        $region36: #{tpu_custom_call.1} parent=31 // pred_fallthru
          _
        %s248 = sand.u32 %s45, 1
        %s249 = scalar_lea.sflag [#allocation3], %s248
        %s250 = sand.u32 %s45, 1
        %s251 = smul.addr %s250, 128
        %s252 = scalar_lea.vmem [#allocation2], %s251
        %p253 = pneg %p58
        %p254 = pneg %p55
        %p255 = pneg %p79
        %p256 = pneg %p76
        %p257 = pneg %p100
        %p258 = pneg %p97
        %p259 = pneg %p128
        %p260 = pneg %p125
        %s261 = smul.u32 32, %s28
        %p262 = scmp.lt.s32.totalorder %s27, 1
        %s263 = scalar_select %p262, %s27, 1
        %p264 = scmp.lt.s32.totalorder %s261, 31
        %s265 = scalar_select %p264, %s261, 31
        %s266 = smul.addr %s263, 32
        %s267 = sadd.s32 %s265, %s266
        %s268 = smul.addr %s267, 4
        %s269 = scalar_lea.vmem %s3, %s268
        %p270 = pneg %p156
        %p271 = pneg %p153
        %s272 = smul.u32 32, %s28
        %p273 = scmp.lt.s32.totalorder %s27, 1
        %s274 = scalar_select %p273, %s27, 1
        %p275 = scmp.lt.s32.totalorder %s272, 31
        %s276 = scalar_select %p275, %s272, 31
        %s277 = smul.addr %s274, 32
        %s278 = sadd.s32 %s276, %s277
        %s279 = smul.addr %s278, 4
        %s280 = scalar_lea.vmem %s4, %s279
        %p281 = pneg %p184
        %p282 = pneg %p181
        %s283 = sand.u32 %s171, 1
        %s284 = scalar_lea.sflag [#allocation4], %s283
        %s285 = sand.u32 %s171, 1
        %s286 = smul.addr %s285, 128
        %s287 = scalar_lea.vmem [#allocation5], %s286
        %s288 = smul.u32 32, %s28
        %s289 = smul.u32 32, %s28
        %p290 = scmp.lt.s32.totalorder %s27, 1
        %s291 = scalar_select %p290, %s27, 1
        %p292 = scmp.lt.s32.totalorder %s289, 31
        %s293 = scalar_select %p292, %s289, 31
        %s294 = smul.addr %s291, 32
        %s295 = sadd.s32 %s293, %s294
        %s296 = smul.addr %s295, 4
        %s297 = scalar_lea.vmem %s3, %s296
        %s298 = smul.u32 32, %s28
        %s299 = smul.u32 32, %s28
        %p300 = scmp.lt.s32.totalorder %s27, 1
        %s301 = scalar_select %p300, %s27, 1
        %p302 = scmp.lt.s32.totalorder %s299, 31
        %s303 = scalar_select %p302, %s299, 31
        %s304 = smul.addr %s301, 32
        %s305 = sadd.s32 %s303, %s304
        %s306 = smul.addr %s305, 4
        %s307 = scalar_lea.vmem %s4, %s306
        %s308 = smul.u32 32, %s28
        %s309 = smul.u32 32, %s28
        %v311 = vld [vmem:[%s243] sm:$0xf]
        %v312 = vld [vmem:[%s243 + $0x4] sm:$0xf]
        %v313 = vld [vmem:[%s243 + $0x8] sm:$0xf]
        %v314 = vld [vmem:[%s243 + $0xc] sm:$0xf]
        %v315 = vld [vmem:[%s243 + $0x10] sm:$0xf]
        %v316 = vld [vmem:[%s243 + $0x14] sm:$0xf]
        %v317 = vld [vmem:[%s243 + $0x18] sm:$0xf]
        %v318 = vld [vmem:[%s243 + $0x1c] sm:$0xf]
        %v319 = vld [vmem:[%s243 + $0x20] sm:$0xf]
        %v320 = vld [vmem:[%s243 + $0x24] sm:$0xf]
        %v321 = vld [vmem:[%s243 + $0x28] sm:$0xf]
        %v322 = vld [vmem:[%s243 + $0x2c] sm:$0xf]
        %v323 = vld [vmem:[%s243 + $0x30] sm:$0xf]
        %v324 = vld [vmem:[%s243 + $0x34] sm:$0xf]
        %v325 = vld [vmem:[%s243 + $0x38] sm:$0xf]
        %v326 = vld [vmem:[%s243 + $0x3c] sm:$0xf]
        %v327 = vld [vmem:[%s243 + $0x40] sm:$0xf]
        %v328 = vld [vmem:[%s243 + $0x44] sm:$0xf]
        %v329 = vld [vmem:[%s243 + $0x48] sm:$0xf]
        %v330 = vld [vmem:[%s243 + $0x4c] sm:$0xf]
        %v331 = vld [vmem:[%s243 + $0x50] sm:$0xf]
        %v332 = vld [vmem:[%s243 + $0x54] sm:$0xf]
        %v333 = vld [vmem:[%s243 + $0x58] sm:$0xf]
        %v334 = vld [vmem:[%s243 + $0x5c] sm:$0xf]
        %v335 = vld [vmem:[%s243 + $0x60] sm:$0xf]
        %v336 = vld [vmem:[%s243 + $0x64] sm:$0xf]
        %v337 = vld [vmem:[%s243 + $0x68] sm:$0xf]
        %v338 = vld [vmem:[%s243 + $0x6c] sm:$0xf]
        %v339 = vld [vmem:[%s243 + $0x70] sm:$0xf]
        %v340 = vld [vmem:[%s243 + $0x74] sm:$0xf]
        %v341 = vld [vmem:[%s243 + $0x78] sm:$0xf]
        %v342 = vld [vmem:[%s243 + $0x7c] sm:$0xf]
        %v343 = vld [vmem:[%s1] sm:$0xff]
        %v344 = vld [vmem:[%s1 + $0x8] sm:$0xff]
        %v345 = vld [vmem:[%s1 + $0x10] sm:$0xff]
        %v346 = vld [vmem:[%s1 + $0x18] sm:$0xff]
        %v347 = vld [vmem:[%s1 + $0x20] sm:$0xff]
        %v348 = vld [vmem:[%s1 + $0x28] sm:$0xff]
        %v349 = vld [vmem:[%s1 + $0x30] sm:$0xff]
        %v350 = vld [vmem:[%s1 + $0x38] sm:$0xff]
        %v351 = vld [vmem:[%s1 + $0x40] sm:$0xff]
        %v352 = vld [vmem:[%s1 + $0x48] sm:$0xff]
        %v353 = vld [vmem:[%s1 + $0x50] sm:$0xff]
        %v354 = vld [vmem:[%s1 + $0x58] sm:$0xff]
        %v355 = vld [vmem:[%s1 + $0x60] sm:$0xff]
        %v356 = vld [vmem:[%s1 + $0x68] sm:$0xff]
        %v357 = vld [vmem:[%s1 + $0x70] sm:$0xff]
        %v358 = vld [vmem:[%s1 + $0x78] sm:$0xff]
        %v359 = vld [vmem:[%s2] sm:$0x3]
        %v361 = vlaneseq
        %v362 = vshrl.u32 %v361, 7
        %v363 = vsub.s32 0, %v362
        %v364 = vrot.slane %v359, %v363
        %v365 = vlaneseq
        %v366 = vshrl.u32 %v365, 7
        %v367 = vsub.s32 1, %v366
        %v368 = vrot.slane %v359, %v367
        %v403 = vunpack.c.l.b16 %v311
        %v404 = vunpack.c.l.b16 %v312
        %v405 = vunpack.c.l.b16 %v313
        %v406 = vunpack.c.l.b16 %v314
        %v407 = vunpack.c.l.b16 %v315
        %v408 = vunpack.c.l.b16 %v316
        %v409 = vunpack.c.l.b16 %v317
        %v410 = vunpack.c.l.b16 %v318
        %v411 = vunpack.c.l.b16 %v319
        %v412 = vunpack.c.l.b16 %v320
        %v413 = vunpack.c.l.b16 %v321
        %v414 = vunpack.c.l.b16 %v322
        %v415 = vunpack.c.l.b16 %v323
        %v416 = vunpack.c.l.b16 %v324
        %v417 = vunpack.c.l.b16 %v325
        %v418 = vunpack.c.l.b16 %v326
        %v419 = vunpack.c.l.b16 %v327
        %v420 = vunpack.c.l.b16 %v328
        %v421 = vunpack.c.l.b16 %v329
        %v422 = vunpack.c.l.b16 %v330
        %v423 = vunpack.c.l.b16 %v331
        %v424 = vunpack.c.l.b16 %v332
        %v425 = vunpack.c.l.b16 %v333
        %v426 = vunpack.c.l.b16 %v334
        %v427 = vunpack.c.l.b16 %v335
        %v428 = vunpack.c.l.b16 %v336
        %v429 = vunpack.c.l.b16 %v337
        %v430 = vunpack.c.l.b16 %v338
        %v431 = vunpack.c.l.b16 %v339
        %v432 = vunpack.c.l.b16 %v340
        %v433 = vunpack.c.l.b16 %v341
        %v434 = vunpack.c.l.b16 %v342
        %v435 = vpack.c.b16 %v404, %v403
        %v436 = vpack.c.b16 %v406, %v405
        %v437 = vpack.c.b16 %v408, %v407
        %v438 = vpack.c.b16 %v410, %v409
        %v439 = vpack.c.b16 %v412, %v411
        %v440 = vpack.c.b16 %v414, %v413
        %v441 = vpack.c.b16 %v416, %v415
        %v442 = vpack.c.b16 %v418, %v417
        %v443 = vpack.c.b16 %v420, %v419
        %v444 = vpack.c.b16 %v422, %v421
        %v445 = vpack.c.b16 %v424, %v423
        %v446 = vpack.c.b16 %v426, %v425
        %v447 = vpack.c.b16 %v428, %v427
        %v448 = vpack.c.b16 %v430, %v429
        %v449 = vpack.c.b16 %v432, %v431
        %v450 = vpack.c.b16 %v434, %v433
        %v483 = vunpack.c.l.b16 %v343
        %v484 = vunpack.c.h.b16 %v343
        %v485 = vunpack.c.l.b16 %v344
        %v486 = vunpack.c.h.b16 %v344
        %v487 = vunpack.c.l.b16 %v345
        %v488 = vunpack.c.h.b16 %v345
        %v489 = vunpack.c.l.b16 %v346
        %v490 = vunpack.c.h.b16 %v346
        %v491 = vunpack.c.l.b16 %v347
        %v492 = vunpack.c.h.b16 %v347
        %v493 = vunpack.c.l.b16 %v348
        %v494 = vunpack.c.h.b16 %v348
        %v495 = vunpack.c.l.b16 %v349
        %v496 = vunpack.c.h.b16 %v349
        %v497 = vunpack.c.l.b16 %v350
        %v498 = vunpack.c.h.b16 %v350
        %v499 = vunpack.c.l.b16 %v351
        %v500 = vunpack.c.h.b16 %v351
        %v501 = vunpack.c.l.b16 %v352
        %v502 = vunpack.c.h.b16 %v352
        %v503 = vunpack.c.l.b16 %v353
        %v504 = vunpack.c.h.b16 %v353
        %v505 = vunpack.c.l.b16 %v354
        %v506 = vunpack.c.h.b16 %v354
        %v507 = vunpack.c.l.b16 %v355
        %v508 = vunpack.c.h.b16 %v355
        %v509 = vunpack.c.l.b16 %v356
        %v510 = vunpack.c.h.b16 %v356
        %v511 = vunpack.c.l.b16 %v357
        %v512 = vunpack.c.h.b16 %v357
        %v513 = vunpack.c.l.b16 %v358
        %v514 = vunpack.c.h.b16 %v358
        %v515 = vpack.c.b16 %v485, %v483
        %v516 = vpack.c.b16 %v486, %v484
        %v517 = vpack.c.b16 %v489, %v487
        %v518 = vpack.c.b16 %v490, %v488
        %v519 = vpack.c.b16 %v493, %v491
        %v520 = vpack.c.b16 %v494, %v492
        %v521 = vpack.c.b16 %v497, %v495
        %v522 = vpack.c.b16 %v498, %v496
        %v523 = vpack.c.b16 %v501, %v499
        %v524 = vpack.c.b16 %v502, %v500
        %v525 = vpack.c.b16 %v505, %v503
        %v526 = vpack.c.b16 %v506, %v504
        %v527 = vpack.c.b16 %v509, %v507
        %v528 = vpack.c.b16 %v510, %v508
        %v529 = vpack.c.b16 %v513, %v511
        %v530 = vpack.c.b16 %v514, %v512
        %547 = vmatprep.subr.bf16.mxu0 %v516
        %548 = vmatpush1.bf16.msra.mxu0 %v515
        %549 = vmatprep.subr.bf16.mxu0 %v518
        %550 = vmatpush1.bf16.msra.mxu0 %v517
        %551 = vmatprep.subr.bf16.mxu0 %v520
        %552 = vmatpush1.bf16.msra.mxu0 %v519
        %553 = vmatprep.subr.bf16.mxu0 %v522
        %554 = vmatpush1.bf16.msra.mxu0 %v521
        %555 = vmatprep.subr.bf16.mxu0 %v524
        %556 = vmatpush1.bf16.msra.mxu0 %v523
        %557 = vmatprep.subr.bf16.mxu0 %v526
        %558 = vmatpush1.bf16.msra.mxu0 %v525
        %559 = vmatprep.subr.bf16.mxu0 %v528
        %560 = vmatpush1.bf16.msra.mxu0 %v527
        %561 = vmatprep.subr.bf16.mxu0 %v530
        %562 = vmatpush1.bf16.msra.mxu0 %v529
        %563 = vmatprep.subr.bf16.mxu0 0
        %564 = vmatpush1.bf16.msra.mxu0 0
        %565 = vmatprep.subr.bf16.mxu0 0
        %566 = vmatpush1.bf16.msra.mxu0 0
        %567 = vmatprep.subr.bf16.mxu0 0
        %568 = vmatpush1.bf16.msra.mxu0 0
        %569 = vmatprep.subr.bf16.mxu0 0
        %570 = vmatpush1.bf16.msra.mxu0 0
        %571 = vmatprep.subr.bf16.mxu0 0
        %572 = vmatpush1.bf16.msra.mxu0 0
        %573 = vmatprep.subr.bf16.mxu0 0
        %574 = vmatpush1.bf16.msra.mxu0 0
        %575 = vmatprep.subr.bf16.mxu0 0
        %576 = vmatpush1.bf16.msra.mxu0 0
        %577 = vmatprep.subr.bf16.mxu0 0
        %578 = vmatpush1.bf16.msra.mxu0 0
        %579 = vmatprep.mubr.bf16.mxu0 0
        %580 = vmatmul.mubr.bf16.gmra.mrb[0].mxu0 %v435
        %v581 = vpop.f32.mrb[0].mxu0
        %v582 = vadd.f32 %v364, %v581
        %v583 = vpop.f32.mrb[0].mxu0
        %v584 = vadd.f32 %v368, %v583
        %v585 = vpop.f32.mrb[0].mxu0
        %v586 = vadd.f32 %v364, %v585
        %v587 = vpop.f32.mrb[0].mxu0
        %v588 = vadd.f32 %v368, %v587
        %589 = vmatprep.mubr.bf16.mxu0 0
        %590 = vmatmul.mubr.bf16.gmra.mrb[0].mxu0 %v436
        %v591 = vpop.f32.mrb[0].mxu0
        %v592 = vadd.f32 %v364, %v591
        %v593 = vpop.f32.mrb[0].mxu0
        %v594 = vadd.f32 %v368, %v593
        %v595 = vpop.f32.mrb[0].mxu0
        %v596 = vadd.f32 %v364, %v595
        %v597 = vpop.f32.mrb[0].mxu0
        %v598 = vadd.f32 %v368, %v597
        %599 = vmatprep.mubr.bf16.mxu0 0
        %600 = vmatmul.mubr.bf16.gmra.mrb[0].mxu0 %v437
        %v601 = vpop.f32.mrb[0].mxu0
        %v602 = vadd.f32 %v364, %v601
        %v603 = vpop.f32.mrb[0].mxu0
        %v604 = vadd.f32 %v368, %v603
        %v605 = vpop.f32.mrb[0].mxu0
        %v606 = vadd.f32 %v364, %v605
        %v607 = vpop.f32.mrb[0].mxu0
        %v608 = vadd.f32 %v368, %v607
        %609 = vmatprep.mubr.bf16.mxu0 0
        %610 = vmatmul.mubr.bf16.gmra.mrb[0].mxu0 %v438
        %v611 = vpop.f32.mrb[0].mxu0
        %v612 = vadd.f32 %v364, %v611
        %v613 = vpop.f32.mrb[0].mxu0
        %v614 = vadd.f32 %v368, %v613
        %v615 = vpop.f32.mrb[0].mxu0
        %v616 = vadd.f32 %v364, %v615
        %v617 = vpop.f32.mrb[0].mxu0
        %v618 = vadd.f32 %v368, %v617
        %619 = vmatprep.mubr.bf16.mxu0 0
        %620 = vmatmul.mubr.bf16.gmra.mrb[0].mxu0 %v439
        %v621 = vpop.f32.mrb[0].mxu0
        %v622 = vadd.f32 %v364, %v621
        %v623 = vpop.f32.mrb[0].mxu0
        %v624 = vadd.f32 %v368, %v623
        %v625 = vpop.f32.mrb[0].mxu0
        %v626 = vadd.f32 %v364, %v625
        %v627 = vpop.f32.mrb[0].mxu0
        %v628 = vadd.f32 %v368, %v627
        %629 = vmatprep.mubr.bf16.mxu0 0
        %630 = vmatmul.mubr.bf16.gmra.mrb[0].mxu0 %v440
        %v631 = vpop.f32.mrb[0].mxu0
        %v632 = vadd.f32 %v364, %v631
        %v633 = vpop.f32.mrb[0].mxu0
        %v634 = vadd.f32 %v368, %v633
        %v635 = vpop.f32.mrb[0].mxu0
        %v636 = vadd.f32 %v364, %v635
        %v637 = vpop.f32.mrb[0].mxu0
        %v638 = vadd.f32 %v368, %v637
        %639 = vmatprep.mubr.bf16.mxu0 0
        %640 = vmatmul.mubr.bf16.gmra.mrb[0].mxu0 %v441
        %v641 = vpop.f32.mrb[0].mxu0
        %v642 = vadd.f32 %v364, %v641
        %v643 = vpop.f32.mrb[0].mxu0
        %v644 = vadd.f32 %v368, %v643
        %v645 = vpop.f32.mrb[0].mxu0
        %v646 = vadd.f32 %v364, %v645
        %v647 = vpop.f32.mrb[0].mxu0
        %v648 = vadd.f32 %v368, %v647
        %649 = vmatprep.mubr.bf16.mxu0 0
        %650 = vmatmul.mubr.bf16.gmra.mrb[0].mxu0 %v442
        %v651 = vpop.f32.mrb[0].mxu0
        %v652 = vadd.f32 %v364, %v651
        %v653 = vpop.f32.mrb[0].mxu0
        %v654 = vadd.f32 %v368, %v653
        %v655 = vpop.f32.mrb[0].mxu0
        %v656 = vadd.f32 %v364, %v655
        %v657 = vpop.f32.mrb[0].mxu0
        %v658 = vadd.f32 %v368, %v657
        %659 = vmatprep.mubr.bf16.mxu0 0
        %660 = vmatmul.mubr.bf16.gmra.mrb[0].mxu0 %v443
        %v661 = vpop.f32.mrb[0].mxu0
        %v662 = vadd.f32 %v364, %v661
        %v663 = vpop.f32.mrb[0].mxu0
        %v664 = vadd.f32 %v368, %v663
        %v665 = vpop.f32.mrb[0].mxu0
        %v666 = vadd.f32 %v364, %v665
        %v667 = vpop.f32.mrb[0].mxu0
        %v668 = vadd.f32 %v368, %v667
        %669 = vmatprep.mubr.bf16.mxu0 0
        %670 = vmatmul.mubr.bf16.gmra.mrb[0].mxu0 %v444
        %v671 = vpop.f32.mrb[0].mxu0
        %v672 = vadd.f32 %v364, %v671
        %v673 = vpop.f32.mrb[0].mxu0
        %v674 = vadd.f32 %v368, %v673
        %v675 = vpop.f32.mrb[0].mxu0
        %v676 = vadd.f32 %v364, %v675
        %v677 = vpop.f32.mrb[0].mxu0
        %v678 = vadd.f32 %v368, %v677
        %679 = vmatprep.mubr.bf16.mxu0 0
        %680 = vmatmul.mubr.bf16.gmra.mrb[0].mxu0 %v445
        %v681 = vpop.f32.mrb[0].mxu0
        %v682 = vadd.f32 %v364, %v681
        %v683 = vpop.f32.mrb[0].mxu0
        %v684 = vadd.f32 %v368, %v683
        %v685 = vpop.f32.mrb[0].mxu0
        %v686 = vadd.f32 %v364, %v685
        %v687 = vpop.f32.mrb[0].mxu0
        %v688 = vadd.f32 %v368, %v687
        %689 = vmatprep.mubr.bf16.mxu0 0
        %690 = vmatmul.mubr.bf16.gmra.mrb[0].mxu0 %v446
        %v691 = vpop.f32.mrb[0].mxu0
        %v692 = vadd.f32 %v364, %v691
        %v693 = vpop.f32.mrb[0].mxu0
        %v694 = vadd.f32 %v368, %v693
        %v695 = vpop.f32.mrb[0].mxu0
        %v696 = vadd.f32 %v364, %v695
        %v697 = vpop.f32.mrb[0].mxu0
        %v698 = vadd.f32 %v368, %v697
        %699 = vmatprep.mubr.bf16.mxu0 0
        %700 = vmatmul.mubr.bf16.gmra.mrb[0].mxu0 %v447
        %v701 = vpop.f32.mrb[0].mxu0
        %v702 = vadd.f32 %v364, %v701
        %v703 = vpop.f32.mrb[0].mxu0
        %v704 = vadd.f32 %v368, %v703
        %v705 = vpop.f32.mrb[0].mxu0
        %v706 = vadd.f32 %v364, %v705
        %v707 = vpop.f32.mrb[0].mxu0
        %v708 = vadd.f32 %v368, %v707
        %709 = vmatprep.mubr.bf16.mxu0 0
        %710 = vmatmul.mubr.bf16.gmra.mrb[0].mxu0 %v448
        %v711 = vpop.f32.mrb[0].mxu0
        %v712 = vadd.f32 %v364, %v711
        %v713 = vpop.f32.mrb[0].mxu0
        %v714 = vadd.f32 %v368, %v713
        %v715 = vpop.f32.mrb[0].mxu0
        %v716 = vadd.f32 %v364, %v715
        %v717 = vpop.f32.mrb[0].mxu0
        %v718 = vadd.f32 %v368, %v717
        %719 = vmatprep.mubr.bf16.mxu0 0
        %720 = vmatmul.mubr.bf16.gmra.mrb[0].mxu0 %v449
        %v721 = vpop.f32.mrb[0].mxu0
        %v722 = vadd.f32 %v364, %v721
        %v723 = vpop.f32.mrb[0].mxu0
        %v724 = vadd.f32 %v368, %v723
        %v725 = vpop.f32.mrb[0].mxu0
        %v726 = vadd.f32 %v364, %v725
        %v727 = vpop.f32.mrb[0].mxu0
        %v728 = vadd.f32 %v368, %v727
        %729 = vmatprep.mubr.bf16.mxu0 0
        %730 = vmatmul.mubr.bf16.gmra.mrb[0].mxu0 %v450
        %v731 = vpop.f32.mrb[0].mxu0
        %v732 = vadd.f32 %v364, %v731
        %v733 = vpop.f32.mrb[0].mxu0
        %v734 = vadd.f32 %v368, %v733
        %v735 = vpop.f32.mrb[0].mxu0
        %v736 = vadd.f32 %v364, %v735
        %v737 = vpop.f32.mrb[0].mxu0
        %v738 = vadd.f32 %v368, %v737
        %739 = vdwg.mxu0
        %v740 = vpack.c.bf16 %v586, %v582
        %v741 = vpack.c.bf16 %v596, %v592
        %v742 = vpack.c.bf16 %v606, %v602
        %v743 = vpack.c.bf16 %v616, %v612
        %v744 = vpack.c.bf16 %v626, %v622
        %v745 = vpack.c.bf16 %v636, %v632
        %v746 = vpack.c.bf16 %v646, %v642
        %v747 = vpack.c.bf16 %v656, %v652
        %v748 = vpack.c.bf16 %v666, %v662
        %v749 = vpack.c.bf16 %v676, %v672
        %v750 = vpack.c.bf16 %v686, %v682
        %v751 = vpack.c.bf16 %v696, %v692
        %v752 = vpack.c.bf16 %v706, %v702
        %v753 = vpack.c.bf16 %v716, %v712
        %v754 = vpack.c.bf16 %v726, %v722
        %v755 = vpack.c.bf16 %v736, %v732
        %v772 = vunpack.c.l.b16 %v740
        %v773 = vunpack.c.h.b16 %v740
        %v774 = vunpack.c.l.b16 %v741
        %v775 = vunpack.c.h.b16 %v741
        %v776 = vunpack.c.l.b16 %v742
        %v777 = vunpack.c.h.b16 %v742
        %v778 = vunpack.c.l.b16 %v743
        %v779 = vunpack.c.h.b16 %v743
        %v780 = vunpack.c.l.b16 %v744
        %v781 = vunpack.c.h.b16 %v744
        %v782 = vunpack.c.l.b16 %v745
        %v783 = vunpack.c.h.b16 %v745
        %v784 = vunpack.c.l.b16 %v746
        %v785 = vunpack.c.h.b16 %v746
        %v786 = vunpack.c.l.b16 %v747
        %v787 = vunpack.c.h.b16 %v747
        %v788 = vunpack.c.l.b16 %v748
        %v789 = vunpack.c.h.b16 %v748
        %v790 = vunpack.c.l.b16 %v749
        %v791 = vunpack.c.h.b16 %v749
        %v792 = vunpack.c.l.b16 %v750
        %v793 = vunpack.c.h.b16 %v750
        %v794 = vunpack.c.l.b16 %v751
        %v795 = vunpack.c.h.b16 %v751
        %v796 = vunpack.c.l.b16 %v752
        %v797 = vunpack.c.h.b16 %v752
        %v798 = vunpack.c.l.b16 %v753
        %v799 = vunpack.c.h.b16 %v753
        %v800 = vunpack.c.l.b16 %v754
        %v801 = vunpack.c.h.b16 %v754
        %v802 = vunpack.c.l.b16 %v755
        %v803 = vunpack.c.h.b16 %v755
        %v804 = vpack.c.b16 %v772, %v772
        %v805 = vpack.c.b16 %v773, %v773
        %v806 = vpack.c.b16 %v774, %v774
        %v807 = vpack.c.b16 %v775, %v775
        %v808 = vpack.c.b16 %v776, %v776
        %v809 = vpack.c.b16 %v777, %v777
        %v810 = vpack.c.b16 %v778, %v778
        %v811 = vpack.c.b16 %v779, %v779
        %v812 = vpack.c.b16 %v780, %v780
        %v813 = vpack.c.b16 %v781, %v781
        %v814 = vpack.c.b16 %v782, %v782
        %v815 = vpack.c.b16 %v783, %v783
        %v816 = vpack.c.b16 %v784, %v784
        %v817 = vpack.c.b16 %v785, %v785
        %v818 = vpack.c.b16 %v786, %v786
        %v819 = vpack.c.b16 %v787, %v787
        %v820 = vpack.c.b16 %v788, %v788
        %v821 = vpack.c.b16 %v789, %v789
        %v822 = vpack.c.b16 %v790, %v790
        %v823 = vpack.c.b16 %v791, %v791
        %v824 = vpack.c.b16 %v792, %v792
        %v825 = vpack.c.b16 %v793, %v793
        %v826 = vpack.c.b16 %v794, %v794
        %v827 = vpack.c.b16 %v795, %v795
        %v828 = vpack.c.b16 %v796, %v796
        %v829 = vpack.c.b16 %v797, %v797
        %v830 = vpack.c.b16 %v798, %v798
        %v831 = vpack.c.b16 %v799, %v799
        %v832 = vpack.c.b16 %v800, %v800
        %v833 = vpack.c.b16 %v801, %v801
        %v834 = vpack.c.b16 %v802, %v802
        %v835 = vpack.c.b16 %v803, %v803
        %868 = vst [vmem:[%s287] sm:$0xf] %v804
        %869 = vst [vmem:[%s287 + $0x4] sm:$0xf] %v805
        %870 = vst [vmem:[%s287 + $0x8] sm:$0xf] %v806
        %871 = vst [vmem:[%s287 + $0xc] sm:$0xf] %v807
        %872 = vst [vmem:[%s287 + $0x10] sm:$0xf] %v808
        %873 = vst [vmem:[%s287 + $0x14] sm:$0xf] %v809
        %874 = vst [vmem:[%s287 + $0x18] sm:$0xf] %v810
        %875 = vst [vmem:[%s287 + $0x1c] sm:$0xf] %v811
        %876 = vst [vmem:[%s287 + $0x20] sm:$0xf] %v812
        %877 = vst [vmem:[%s287 + $0x24] sm:$0xf] %v813
        %878 = vst [vmem:[%s287 + $0x28] sm:$0xf] %v814
        %879 = vst [vmem:[%s287 + $0x2c] sm:$0xf] %v815
        %880 = vst [vmem:[%s287 + $0x30] sm:$0xf] %v816
        %881 = vst [vmem:[%s287 + $0x34] sm:$0xf] %v817
        %882 = vst [vmem:[%s287 + $0x38] sm:$0xf] %v818
        %883 = vst [vmem:[%s287 + $0x3c] sm:$0xf] %v819
        %884 = vst [vmem:[%s287 + $0x40] sm:$0xf] %v820
        %885 = vst [vmem:[%s287 + $0x44] sm:$0xf] %v821
        %886 = vst [vmem:[%s287 + $0x48] sm:$0xf] %v822
        %887 = vst [vmem:[%s287 + $0x4c] sm:$0xf] %v823
        %888 = vst [vmem:[%s287 + $0x50] sm:$0xf] %v824
        %889 = vst [vmem:[%s287 + $0x54] sm:$0xf] %v825
        %890 = vst [vmem:[%s287 + $0x58] sm:$0xf] %v826
        %891 = vst [vmem:[%s287 + $0x5c] sm:$0xf] %v827
        %892 = vst [vmem:[%s287 + $0x60] sm:$0xf] %v828
        %893 = vst [vmem:[%s287 + $0x64] sm:$0xf] %v829
        %894 = vst [vmem:[%s287 + $0x68] sm:$0xf] %v830
        %895 = vst [vmem:[%s287 + $0x6c] sm:$0xf] %v831
        %896 = vst [vmem:[%s287 + $0x70] sm:$0xf] %v832
        %897 = vst [vmem:[%s287 + $0x74] sm:$0xf] %v833
        %898 = vst [vmem:[%s287 + $0x78] sm:$0xf] %v834
        %899 = vst [vmem:[%s287 + $0x7c] sm:$0xf] %v835
        %v900 = vpack.c.bf16 %v588, %v584
        %v901 = vpack.c.bf16 %v598, %v594
        %v902 = vpack.c.bf16 %v608, %v604
        %v903 = vpack.c.bf16 %v618, %v614
        %v904 = vpack.c.bf16 %v628, %v624
        %v905 = vpack.c.bf16 %v638, %v634
        %v906 = vpack.c.bf16 %v648, %v644
        %v907 = vpack.c.bf16 %v658, %v654
        %v908 = vpack.c.bf16 %v668, %v664
        %v909 = vpack.c.bf16 %v678, %v674
        %v910 = vpack.c.bf16 %v688, %v684
        %v911 = vpack.c.bf16 %v698, %v694
        %v912 = vpack.c.bf16 %v708, %v704
        %v913 = vpack.c.bf16 %v718, %v714
        %v914 = vpack.c.bf16 %v728, %v724
        %v915 = vpack.c.bf16 %v738, %v734
        %v932 = vunpack.c.l.b16 %v900
        %v933 = vunpack.c.h.b16 %v900
        %v934 = vunpack.c.l.b16 %v901
        %v935 = vunpack.c.h.b16 %v901
        %v936 = vunpack.c.l.b16 %v902
        %v937 = vunpack.c.h.b16 %v902
        %v938 = vunpack.c.l.b16 %v903
        %v939 = vunpack.c.h.b16 %v903
        %v940 = vunpack.c.l.b16 %v904
        %v941 = vunpack.c.h.b16 %v904
        %v942 = vunpack.c.l.b16 %v905
        %v943 = vunpack.c.h.b16 %v905
        %v944 = vunpack.c.l.b16 %v906
        %v945 = vunpack.c.h.b16 %v906
        %v946 = vunpack.c.l.b16 %v907
        %v947 = vunpack.c.h.b16 %v907
        %v948 = vunpack.c.l.b16 %v908
        %v949 = vunpack.c.h.b16 %v908
        %v950 = vunpack.c.l.b16 %v909
        %v951 = vunpack.c.h.b16 %v909
        %v952 = vunpack.c.l.b16 %v910
        %v953 = vunpack.c.h.b16 %v910
        %v954 = vunpack.c.l.b16 %v911
        %v955 = vunpack.c.h.b16 %v911
        %v956 = vunpack.c.l.b16 %v912
        %v957 = vunpack.c.h.b16 %v912
        %v958 = vunpack.c.l.b16 %v913
        %v959 = vunpack.c.h.b16 %v913
        %v960 = vunpack.c.l.b16 %v914
        %v961 = vunpack.c.h.b16 %v914
        %v962 = vunpack.c.l.b16 %v915
        %v963 = vunpack.c.h.b16 %v915
        %v964 = vpack.c.b16 %v932, %v932
        %v965 = vpack.c.b16 %v933, %v933
        %v966 = vpack.c.b16 %v934, %v934
        %v967 = vpack.c.b16 %v935, %v935
        %v968 = vpack.c.b16 %v936, %v936
        %v969 = vpack.c.b16 %v937, %v937
        %v970 = vpack.c.b16 %v938, %v938
        %v971 = vpack.c.b16 %v939, %v939
        %v972 = vpack.c.b16 %v940, %v940
        %v973 = vpack.c.b16 %v941, %v941
        %v974 = vpack.c.b16 %v942, %v942
        %v975 = vpack.c.b16 %v943, %v943
        %v976 = vpack.c.b16 %v944, %v944
        %v977 = vpack.c.b16 %v945, %v945
        %v978 = vpack.c.b16 %v946, %v946
        %v979 = vpack.c.b16 %v947, %v947
        %v980 = vpack.c.b16 %v948, %v948
        %v981 = vpack.c.b16 %v949, %v949
        %v982 = vpack.c.b16 %v950, %v950
        %v983 = vpack.c.b16 %v951, %v951
        %v984 = vpack.c.b16 %v952, %v952
        %v985 = vpack.c.b16 %v953, %v953
        %v986 = vpack.c.b16 %v954, %v954
        %v987 = vpack.c.b16 %v955, %v955
        %v988 = vpack.c.b16 %v956, %v956
        %v989 = vpack.c.b16 %v957, %v957
        %v990 = vpack.c.b16 %v958, %v958
        %v991 = vpack.c.b16 %v959, %v959
        %v992 = vpack.c.b16 %v960, %v960
        %v993 = vpack.c.b16 %v961, %v961
        %v994 = vpack.c.b16 %v962, %v962
        %v995 = vpack.c.b16 %v963, %v963
        %vm1028 = vcmask 11264
        %1029 = vst.msk [vmem:[%s297] sm:$0xf] %vm1028, %v964
        %1030 = vst.msk [vmem:[%s297 + $0x4] sm:$0xf] %vm1028, %v965
        %1031 = vst.msk [vmem:[%s297 + $0x8] sm:$0xf] %vm1028, %v966
        %1032 = vst.msk [vmem:[%s297 + $0xc] sm:$0xf] %vm1028, %v967
        %1033 = vst.msk [vmem:[%s297 + $0x10] sm:$0xf] %vm1028, %v968
        %1034 = vst.msk [vmem:[%s297 + $0x14] sm:$0xf] %vm1028, %v969
        %1035 = vst.msk [vmem:[%s297 + $0x18] sm:$0xf] %vm1028, %v970
        %1036 = vst.msk [vmem:[%s297 + $0x1c] sm:$0xf] %vm1028, %v971
        %1037 = vst.msk [vmem:[%s297 + $0x20] sm:$0xf] %vm1028, %v972
        %1038 = vst.msk [vmem:[%s297 + $0x24] sm:$0xf] %vm1028, %v973
        %1039 = vst.msk [vmem:[%s297 + $0x28] sm:$0xf] %vm1028, %v974
        %1040 = vst.msk [vmem:[%s297 + $0x2c] sm:$0xf] %vm1028, %v975
        %1041 = vst.msk [vmem:[%s297 + $0x30] sm:$0xf] %vm1028, %v976
        %1042 = vst.msk [vmem:[%s297 + $0x34] sm:$0xf] %vm1028, %v977
        %1043 = vst.msk [vmem:[%s297 + $0x38] sm:$0xf] %vm1028, %v978
        %1044 = vst.msk [vmem:[%s297 + $0x3c] sm:$0xf] %vm1028, %v979
        %1045 = vst.msk [vmem:[%s297 + $0x40] sm:$0xf] %vm1028, %v980
        %1046 = vst.msk [vmem:[%s297 + $0x44] sm:$0xf] %vm1028, %v981
        %1047 = vst.msk [vmem:[%s297 + $0x48] sm:$0xf] %vm1028, %v982
        %1048 = vst.msk [vmem:[%s297 + $0x4c] sm:$0xf] %vm1028, %v983
        %1049 = vst.msk [vmem:[%s297 + $0x50] sm:$0xf] %vm1028, %v984
        %1050 = vst.msk [vmem:[%s297 + $0x54] sm:$0xf] %vm1028, %v985
        %1051 = vst.msk [vmem:[%s297 + $0x58] sm:$0xf] %vm1028, %v986
        %1052 = vst.msk [vmem:[%s297 + $0x5c] sm:$0xf] %vm1028, %v987
        %1053 = vst.msk [vmem:[%s297 + $0x60] sm:$0xf] %vm1028, %v988
        %1054 = vst.msk [vmem:[%s297 + $0x64] sm:$0xf] %vm1028, %v989
        %1055 = vst.msk [vmem:[%s297 + $0x68] sm:$0xf] %vm1028, %v990
        %1056 = vst.msk [vmem:[%s297 + $0x6c] sm:$0xf] %vm1028, %v991
        %1057 = vst.msk [vmem:[%s297 + $0x70] sm:$0xf] %vm1028, %v992
        %1058 = vst.msk [vmem:[%s297 + $0x74] sm:$0xf] %vm1028, %v993
        %1059 = vst.msk [vmem:[%s297 + $0x78] sm:$0xf] %vm1028, %v994
        %1060 = vst.msk [vmem:[%s297 + $0x7c] sm:$0xf] %vm1028, %v995
        %1061 = vrot.lane.b32.xlu0 %v964, 126
        %v1062 = vpop.permute.xlu0 %1061
        %1063 = vrot.lane.b32.xlu0 %v965, 126
        %v1064 = vpop.permute.xlu0 %1063
        %1065 = vrot.lane.b32.xlu0 %v966, 126
        %v1066 = vpop.permute.xlu0 %1065
        %1067 = vrot.lane.b32.xlu0 %v967, 126
        %v1068 = vpop.permute.xlu0 %1067
        %1069 = vrot.lane.b32.xlu0 %v968, 126
        %v1070 = vpop.permute.xlu0 %1069
        %1071 = vrot.lane.b32.xlu0 %v969, 126
        %v1072 = vpop.permute.xlu0 %1071
        %1073 = vrot.lane.b32.xlu0 %v970, 126
        %v1074 = vpop.permute.xlu0 %1073
        %1075 = vrot.lane.b32.xlu0 %v971, 126
        %v1076 = vpop.permute.xlu0 %1075
        %1077 = vrot.lane.b32.xlu0 %v972, 126
        %v1078 = vpop.permute.xlu0 %1077
        %1079 = vrot.lane.b32.xlu0 %v973, 126
        %v1080 = vpop.permute.xlu0 %1079
        %1081 = vrot.lane.b32.xlu0 %v974, 126
        %v1082 = vpop.permute.xlu0 %1081
        %1083 = vrot.lane.b32.xlu0 %v975, 126
        %v1084 = vpop.permute.xlu0 %1083
        %1085 = vrot.lane.b32.xlu0 %v976, 126
        %v1086 = vpop.permute.xlu0 %1085
        %1087 = vrot.lane.b32.xlu0 %v977, 126
        %v1088 = vpop.permute.xlu0 %1087
        %1089 = vrot.lane.b32.xlu0 %v978, 126
        %v1090 = vpop.permute.xlu0 %1089
        %1091 = vrot.lane.b32.xlu0 %v979, 126
        %v1092 = vpop.permute.xlu0 %1091
        %1093 = vrot.lane.b32.xlu0 %v980, 126
        %v1094 = vpop.permute.xlu0 %1093
        %1095 = vrot.lane.b32.xlu0 %v981, 126
        %v1096 = vpop.permute.xlu0 %1095
        %1097 = vrot.lane.b32.xlu0 %v982, 126
        %v1098 = vpop.permute.xlu0 %1097
        %1099 = vrot.lane.b32.xlu0 %v983, 126
        %v1100 = vpop.permute.xlu0 %1099
        %1101 = vrot.lane.b32.xlu0 %v984, 126
        %v1102 = vpop.permute.xlu0 %1101
        %1103 = vrot.lane.b32.xlu0 %v985, 126
        %v1104 = vpop.permute.xlu0 %1103
        %1105 = vrot.lane.b32.xlu0 %v986, 126
        %v1106 = vpop.permute.xlu0 %1105
        %1107 = vrot.lane.b32.xlu0 %v987, 126
        %v1108 = vpop.permute.xlu0 %1107
        %1109 = vrot.lane.b32.xlu0 %v988, 126
        %v1110 = vpop.permute.xlu0 %1109
        %1111 = vrot.lane.b32.xlu0 %v989, 126
        %v1112 = vpop.permute.xlu0 %1111
        %1113 = vrot.lane.b32.xlu0 %v990, 126
        %v1114 = vpop.permute.xlu0 %1113
        %1115 = vrot.lane.b32.xlu0 %v991, 126
        %v1116 = vpop.permute.xlu0 %1115
        %1117 = vrot.lane.b32.xlu0 %v992, 126
        %v1118 = vpop.permute.xlu0 %1117
        %1119 = vrot.lane.b32.xlu0 %v993, 126
        %v1120 = vpop.permute.xlu0 %1119
        %1121 = vrot.lane.b32.xlu0 %v994, 126
        %v1122 = vpop.permute.xlu0 %1121
        %1123 = vrot.lane.b32.xlu0 %v995, 126
        %v1124 = vpop.permute.xlu0 %1123
        %1157 = vst.msk [vmem:[%s307] sm:$0xf] %vm1028, %v1062
        %1158 = vst.msk [vmem:[%s307 + $0x4] sm:$0xf] %vm1028, %v1064
        %1159 = vst.msk [vmem:[%s307 + $0x8] sm:$0xf] %vm1028, %v1066
        %1160 = vst.msk [vmem:[%s307 + $0xc] sm:$0xf] %vm1028, %v1068
        %1161 = vst.msk [vmem:[%s307 + $0x10] sm:$0xf] %vm1028, %v1070
        %1162 = vst.msk [vmem:[%s307 + $0x14] sm:$0xf] %vm1028, %v1072
        %1163 = vst.msk [vmem:[%s307 + $0x18] sm:$0xf] %vm1028, %v1074
        %1164 = vst.msk [vmem:[%s307 + $0x1c] sm:$0xf] %vm1028, %v1076
        %1165 = vst.msk [vmem:[%s307 + $0x20] sm:$0xf] %vm1028, %v1078
        %1166 = vst.msk [vmem:[%s307 + $0x24] sm:$0xf] %vm1028, %v1080
        %1167 = vst.msk [vmem:[%s307 + $0x28] sm:$0xf] %vm1028, %v1082
        %1168 = vst.msk [vmem:[%s307 + $0x2c] sm:$0xf] %vm1028, %v1084
        %1169 = vst.msk [vmem:[%s307 + $0x30] sm:$0xf] %vm1028, %v1086
        %1170 = vst.msk [vmem:[%s307 + $0x34] sm:$0xf] %vm1028, %v1088
        %1171 = vst.msk [vmem:[%s307 + $0x38] sm:$0xf] %vm1028, %v1090
        %1172 = vst.msk [vmem:[%s307 + $0x3c] sm:$0xf] %vm1028, %v1092
        %1173 = vst.msk [vmem:[%s307 + $0x40] sm:$0xf] %vm1028, %v1094
        %1174 = vst.msk [vmem:[%s307 + $0x44] sm:$0xf] %vm1028, %v1096
        %1175 = vst.msk [vmem:[%s307 + $0x48] sm:$0xf] %vm1028, %v1098
        %1176 = vst.msk [vmem:[%s307 + $0x4c] sm:$0xf] %vm1028, %v1100
        %1177 = vst.msk [vmem:[%s307 + $0x50] sm:$0xf] %vm1028, %v1102
        %1178 = vst.msk [vmem:[%s307 + $0x54] sm:$0xf] %vm1028, %v1104
        %1179 = vst.msk [vmem:[%s307 + $0x58] sm:$0xf] %vm1028, %v1106
        %1180 = vst.msk [vmem:[%s307 + $0x5c] sm:$0xf] %vm1028, %v1108
        %1181 = vst.msk [vmem:[%s307 + $0x60] sm:$0xf] %vm1028, %v1110
        %1182 = vst.msk [vmem:[%s307 + $0x64] sm:$0xf] %vm1028, %v1112
        %1183 = vst.msk [vmem:[%s307 + $0x68] sm:$0xf] %vm1028, %v1114
        %1184 = vst.msk [vmem:[%s307 + $0x6c] sm:$0xf] %vm1028, %v1116
        %1185 = vst.msk [vmem:[%s307 + $0x70] sm:$0xf] %vm1028, %v1118
        %1186 = vst.msk [vmem:[%s307 + $0x74] sm:$0xf] %vm1028, %v1120
        %1187 = vst.msk [vmem:[%s307 + $0x78] sm:$0xf] %vm1028, %v1122
        %1188 = vst.msk [vmem:[%s307 + $0x7c] sm:$0xf] %vm1028, %v1124
        %s1189 = smul.u32 32, %s28
        %p1190 = scmp.lt.s32.totalorder %s27, 1
        %s1191 = scalar_select %p1190, %s27, 1
        %p1192 = scmp.lt.s32.totalorder %s1189, 31
        %s1193 = scalar_select %p1192, %s1189, 31
        %s1194 = smul.addr %s1191, 32
        %s1195 = sadd.s32 %s1193, %s1194
        %s1196 = smul.addr %s1195, 4
        %s1197 = scalar_lea.vmem %s3, %s1196
        %s1198 = smul.u32 32, %s28
        %p1199 = scmp.lt.s32.totalorder %s27, 1
        %s1200 = scalar_select %p1199, %s27, 1
        %p1201 = scmp.lt.s32.totalorder %s1198, 31
        %s1202 = scalar_select %p1201, %s1198, 31
        %s1203 = smul.addr %s1200, 32
        %s1204 = sadd.s32 %s1202, %s1203
        %s1205 = smul.addr %s1204, 4
        %s1206 = scalar_lea.vmem %s4, %s1205
        %s1207 = sand.u32 %s171, 1
        %s1208 = scalar_lea.sflag [#allocation4], %s1207
        %s1209 = sand.u32 %s171, 1
        %s1210 = smul.addr %s1209, 128
        %s1211 = scalar_lea.vmem [#allocation5], %s1210
        // Predicated region
        $region37: #{tpu_custom_call.1} parent=31 // pred_check
          %p1212 = pneg %p125
        $region38: #{tpu_custom_call.1} parent=31 // pred_check_branch
          %1214 = sbr.rel (%p1212) target = $region40
        $region39: #{tpu_custom_call.1} parent=31 // pred_region
          %s1215 = smul.u32 32, %s28
        $region40: #{tpu_custom_call.1} parent=31 // pred_fallthru
          _
        // Predicated region
        $region41: #{tpu_custom_call.1} parent=31 // pred_check
          %p1216 = pneg %p153
        $region42: #{tpu_custom_call.1} parent=31 // pred_check_branch
          %1218 = sbr.rel (%p1216) target = $region44
        $region43: #{tpu_custom_call.1} parent=31 // pred_region
          %s1219 = smul.u32 32, %s28
        $region44: #{tpu_custom_call.1} parent=31 // pred_fallthru
          _
        // Predicated region
        $region45: #{tpu_custom_call.1} parent=31 // pred_check
          %p1220 = pneg %p181
        $region46: #{tpu_custom_call.1} parent=31 // pred_check_branch
          %1222 = sbr.rel (%p1220) target = $region48
        $region47: #{tpu_custom_call.1} parent=31 // pred_region
          %s1223 = smul.u32 32, %s28
          %s1225 = ssub.s32 2048, 2048
          %1226 = vsyncadd %s1208, %s1225
          %s1227 = smul.addr %s27, 32
          %s1228 = sadd.s32 %s1223, %s1227
          %s1229 = smul.addr %s1228, 64
          %s1230 = scalar_lea.hbm %s5, %s1229
          %s1231 = sshll.u32 %s1211, 4
          %s1232 = int_to_ptr.vmem [resolvable:$true] %s1231
          %1237 = dma.vmem_to_hbm [thread:$0]  %s1232, 2048, %s1230, %s1208, 64, 64, 4
        $region48: #{tpu_custom_call.1} parent=31 // pred_fallthru
          _
      $region32: #{tpu_custom_call.1} parent=5 // pred_fallthru
        _
      %p1238 = scmp.le.s32.totalorder 2, %s18
      // Predicated region
      $region49: #{tpu_custom_call.1} parent=5 // pred_check
        %p1239 = pneg %p1238
      $region50: #{tpu_custom_call.1} parent=5 // pred_check_branch
        %1241 = sbr.rel (%p1239) target = $region52
      $region51: #{tpu_custom_call.1} parent=5 // pred_region
        %s1242 = ssub.s32 %s18, 2
        // Predicated region
        $region53: #{tpu_custom_call.1} parent=51 // pred_check
          %p1243 = pneg %p131
        $region54: #{tpu_custom_call.1} parent=51 // pred_check_branch
          %1245 = sbr.rel (%p1243) target = $region56
        $region55: #{tpu_custom_call.1} parent=51 // pred_region
          %s1246 = smul.u32 32, %s30
          %p1247 = scmp.lt.s32.totalorder %s29, 1
          %s1248 = scalar_select %p1247, %s29, 1
          %p1249 = scmp.lt.s32.totalorder %s1246, 31
          %s1250 = scalar_select %p1249, %s1246, 31
          %s1251 = smul.addr %s1248, 32
          %s1252 = sadd.s32 %s1250, %s1251
          %s1253 = smul.addr %s1252, 4
          %s1254 = scalar_lea.vmem %s3, %s1253
        $region56: #{tpu_custom_call.1} parent=51 // pred_fallthru
          _
        // Predicated region
        $region57: #{tpu_custom_call.1} parent=51 // pred_check
          %p1255 = pneg %p159
        $region58: #{tpu_custom_call.1} parent=51 // pred_check_branch
          %1257 = sbr.rel (%p1255) target = $region60
        $region59: #{tpu_custom_call.1} parent=51 // pred_region
          %s1258 = smul.u32 32, %s30
          %p1259 = scmp.lt.s32.totalorder %s29, 1
          %s1260 = scalar_select %p1259, %s29, 1
          %p1261 = scmp.lt.s32.totalorder %s1258, 31
          %s1262 = scalar_select %p1261, %s1258, 31
          %s1263 = smul.addr %s1260, 32
          %s1264 = sadd.s32 %s1262, %s1263
          %s1265 = smul.addr %s1264, 4
          %s1266 = scalar_lea.vmem %s4, %s1265
        $region60: #{tpu_custom_call.1} parent=51 // pred_fallthru
          _
        // Predicated region
        $region61: #{tpu_custom_call.1} parent=51 // pred_check
          %p1267 = pneg %p187
        $region62: #{tpu_custom_call.1} parent=51 // pred_check_branch
          %1269 = sbr.rel (%p1267) target = $region64
        $region63: #{tpu_custom_call.1} parent=51 // pred_region
          %s1270 = sand.u32 %s172, 1
          %s1271 = scalar_lea.sflag [#allocation4], %s1270
          %s1272 = sand.u32 %s172, 1
          %s1273 = smul.addr %s1272, 128
          %s1274 = scalar_lea.vmem [#allocation5], %s1273
          %1275 = dma.done %s1271, 2048
        $region64: #{tpu_custom_call.1} parent=51 // pred_fallthru
          _
      $region52: #{tpu_custom_call.1} parent=5 // pred_fallthru
        _
    $region6: #{tpu_custom_call.1} parent=1 // loop_footer
      %s22 = sadd.s32 1, %s18
    $region7: #{tpu_custom_call.1} parent=1 // loop_footer_branch
      %17 = sbr.rel target = $region3
    $region8: #{tpu_custom_call.1} parent=1 // loop_exit
      _
    %1276 = vsyncpa [#allocation3], 1
    %s1277 = scalar_lea.sflag [#allocation3], 1
    %1278 = vsyncpa %s1277, 1
    %1279 = vsyncpa [#allocation4], 1
    %s1280 = scalar_lea.sflag [#allocation4], 1
    %1281 = vsyncpa %s1280, 1

</llo_original>
